<compile_context>
chip_gen: v5e
topology: v5e:2x2
jax: 0.10.0
libtpu: 0.0.40
codegen_flags: <defaults>
</compile_context>

<pallas_src>
import jax
import jax.numpy as jnp
from jax.experimental import pallas as pl
from jax.experimental.pallas import tpu as pltpu


def mlp_kernel(x_ref, w1_ref, b1_ref, w2_ref, b2_ref, o_ref):
    # Layer 0: cast activation tile to bf16 in-kernel, MXU matmul with fp32 acc,
    # bias + ReLU in fp32 (v5e VPU has no bf16 path).
    x = x_ref[...].astype(w1_ref.dtype)
    h = jnp.dot(x, w1_ref[...], preferred_element_type=jnp.float32)
    h = jnp.maximum(h + b1_ref[...], 0.0)
    # Layer 1: hidden back to bf16 for the MXU, fp32 acc, fp32 epilogue,
    # store in the (bf16) output dtype -> lane-dense unmasked stores.
    o = jnp.dot(h.astype(w2_ref.dtype), w2_ref[...],
                preferred_element_type=jnp.float32)
    o_ref[...] = jnp.maximum(o + b2_ref[...], 0.0).astype(o_ref.dtype)


def _round_up(n, m):
    return ((n + m - 1) // m) * m


def prepare_params(w1, b1, w2, b2, *, compute_dtype=jnp.bfloat16):
    """One-time parameter formatting (hoisted out of the per-call path).

    w1: (D, H)   b1: (H,) or (1, H)   w2: (H, H)   b2: (H,) or (1, H)
    Returns bf16 weights padded to lane-dense Hp = round_up(H, 128) feature
    dims (zero padding is inert through Linear+ReLU) and fp32 biases, plus H.
    """
    D, H = w1.shape
    assert w2.shape == (H, H), w2.shape
    Hp = _round_up(H, 128)
    b1 = jnp.asarray(b1).reshape(1, H)
    b2 = jnp.asarray(b2).reshape(1, H)
    w1p = jnp.zeros((D, Hp), compute_dtype).at[:, :H].set(w1.astype(compute_dtype))
    w2p = jnp.zeros((Hp, Hp), compute_dtype).at[:H, :H].set(w2.astype(compute_dtype))
    b1p = jnp.zeros((1, Hp), jnp.float32).at[:, :H].set(b1.astype(jnp.float32))
    b2p = jnp.zeros((1, Hp), jnp.float32).at[:, :H].set(b2.astype(jnp.float32))
    return w1p, b1p, w2p, b2p, H


def mlp_forward(x, w1p, b1p, w2p, b2p, h_dim, *, tb_max=1024,
                out_dtype=jnp.bfloat16):
    """Fused 2-layer MLP forward.

    x: (B, D) fp32 (unpadded).  w1p/b1p/w2p/b2p: output of prepare_params.
    Returns (B, h_dim) in out_dtype.
    """
    B, D = x.shape
    assert w1p.shape[0] == D, (w1p.shape, D)
    Hp = w1p.shape[1]

    # Batch tile: sublane-aligned (multiple of 8), capped at tb_max, and sized
    # so the grid has >= 2 steps whenever B >= 16 (v7x megacore sharding via
    # the "parallel" dimension semantic). Partial final block handles the
    # remainder; its garbage rows are row-independent and discarded on store.
    TB = max(8, min(tb_max, _round_up(pl.cdiv(B, 2), 8)))
    grid = (pl.cdiv(B, TB),)

    out = pl.pallas_call(
        mlp_kernel,
        out_shape=jax.ShapeDtypeStruct((B, Hp), out_dtype),
        grid=grid,
        in_specs=[
            pl.BlockSpec((TB, D), lambda i: (i, 0)),    # x tile, pipelined over batch
            pl.BlockSpec((D, Hp), lambda i: (0, 0)),    # W1 resident in VMEM
            pl.BlockSpec((1, Hp), lambda i: (0, 0)),    # b1 resident
            pl.BlockSpec((Hp, Hp), lambda i: (0, 0)),   # W2 resident
            pl.BlockSpec((1, Hp), lambda i: (0, 0)),    # b2 resident
        ],
        out_specs=pl.BlockSpec((TB, Hp), lambda i: (i, 0)),
        compiler_params=pltpu.CompilerParams(
            dimension_semantics=("parallel",),          # 2 TCs on v7x; no-op v5e/v6e
            vmem_limit_bytes=48 * 1024 * 1024,          # > 32 MiB default, < 64 MiB v7x
        ),
    )(x, w1p, b1p, w2p, b2p)

    # Slice off feature padding only when needed (skip the extra HBM pass when
    # H is already a multiple of 128).
    if Hp != h_dim:
        out = out[:, :h_dim]
    return out


def init_params(key, d_in, d_hidden):
    """Deterministic synthetic parameters (Kaiming-style scaling, like
    init_module with ReLU gain)."""
    k1, k2, k3, k4 = jax.random.split(key, 4)
    w1 = jax.random.normal(k1, (d_in, d_hidden), jnp.float32) * jnp.sqrt(2.0 / d_in)
    b1 = jax.random.normal(k2, (1, d_hidden), jnp.float32) * 0.01
    w2 = jax.random.normal(k3, (d_hidden, d_hidden), jnp.float32) * jnp.sqrt(2.0 / d_hidden)
    b2 = jax.random.normal(k4, (1, d_hidden), jnp.float32) * 0.01
    return w1, b1, w2, b2


def ref_forward(x, w1, b1, w2, b2, compute_dtype=jnp.bfloat16,
                out_dtype=jnp.bfloat16):
    """Pure-JAX reference mirroring the kernel's dtype flow
    (bf16 matmul inputs, fp32 accumulation/epilogue, out_dtype store)."""
    xb = x.astype(compute_dtype)
    h = jnp.maximum(
        jnp.dot(xb, w1.astype(compute_dtype), preferred_element_type=jnp.float32)
        + b1.reshape(1, -1).astype(jnp.float32), 0.0)
    o = jnp.dot(h.astype(compute_dtype), w2.astype(compute_dtype),
                preferred_element_type=jnp.float32) + b2.reshape(1, -1).astype(jnp.float32)
    return jnp.maximum(o, 0.0).astype(out_dtype)


if __name__ == "__main__":
    # Small shapes consistent with the module: pins={'dim': 16},
    # phidden={'dim': 32, 'nlayers': 2}, pouts=None.
    B, D_IN, HIDDEN = 8, 16, 32

    key = jax.random.PRNGKey(0)
    kx, kp = jax.random.split(key)
    x = jax.random.normal(kx, (B, D_IN), jnp.float32)
    w1, b1, w2, b2 = init_params(kp, D_IN, HIDDEN)

    # One-time parameter formatting (hoisted out of the forward path).
    w1p, b1p, w2p, b2p, h_dim = prepare_params(w1, b1, w2, b2)

    out = mlp_forward(x, w1p, b1p, w2p, b2p, h_dim)
    jax.block_until_ready(out)

    ref = ref_forward(x, w1, b1, w2, b2)
    assert out.shape == (B, HIDDEN), out.shape
    err = jnp.max(jnp.abs(out.astype(jnp.float32) - ref.astype(jnp.float32)))
    assert jnp.allclose(out.astype(jnp.float32), ref.astype(jnp.float32),
                        atol=3e-2, rtol=3e-2), float(err)

    print("KERNEL_OK")
</pallas_src>

<mosaic_0001>
module attributes {stable_mosaic.version = 11 : i64} {
  func.func @mlp_kernel(%arg0: i32, %arg1: memref<8x16xf32, #tpu.memory_space<vmem>>, %arg2: memref<16x128xbf16, #tpu.memory_space<vmem>>, %arg3: memref<1x128xf32, #tpu.memory_space<vmem>>, %arg4: memref<128x128xbf16, #tpu.memory_space<vmem>>, %arg5: memref<1x128xf32, #tpu.memory_space<vmem>>, %arg6: memref<8x128xbf16, #tpu.memory_space<vmem>>) attributes {dimension_semantics = [#tpu.dimension_semantics<parallel>], iteration_bounds = array<i64: 1>, scalar_prefetch = 0 : i64, scratch_operands = 0 : i64, tpu.core_type = #tpu.core_type<tc>, window_params = [{transform_indices = @transform_0, window_bounds = array<i64: 8, 16>}, {pipeline_mode = #tpu.pipeline_mode<synchronous>, transform_indices = @transform_1, window_bounds = array<i64: 16, 128>}, {pipeline_mode = #tpu.pipeline_mode<synchronous>, transform_indices = @transform_2, window_bounds = array<i64: 1, 128>}, {pipeline_mode = #tpu.pipeline_mode<synchronous>, transform_indices = @transform_3, window_bounds = array<i64: 128, 128>}, {pipeline_mode = #tpu.pipeline_mode<synchronous>, transform_indices = @transform_4, window_bounds = array<i64: 1, 128>}, {transform_indices = @transform_5, window_bounds = array<i64: 8, 128>}]} {
    %c0 = arith.constant 0 : index
    %c0_0 = arith.constant 0 : index
    %0 = vector.load %arg1[%c0, %c0_0] : memref<8x16xf32, #tpu.memory_space<vmem>>, vector<8x16xf32>
    %1 = arith.truncf %0 : vector<8x16xf32> to vector<8x16xbf16>
    %c0_1 = arith.constant 0 : index
    %c0_2 = arith.constant 0 : index
    %2 = vector.load %arg2[%c0_1, %c0_2] : memref<16x128xbf16, #tpu.memory_space<vmem>>, vector<16x128xbf16>
    %cst = arith.constant dense<0.000000e+00> : vector<8x128xf32>
    %3 = tpu.matmul %1, %2, %cst {dimension_numbers = #tpu.dot_dimension_numbers<[1], [0], [0], [1], [0, 0, 1, 1], [], []>} : vector<8x16xbf16>, vector<16x128xbf16>, vector<8x128xf32> -> vector<8x128xf32>
    %c0_3 = arith.constant 0 : index
    %c0_4 = arith.constant 0 : index
    %4 = vector.load %arg3[%c0_3, %c0_4] : memref<1x128xf32, #tpu.memory_space<vmem>>, vector<1x128xf32>
    %5 = vector.broadcast %4 : vector<1x128xf32> to vector<8x128xf32>
    %6 = arith.addf %3, %5 : vector<8x128xf32>
    %cst_5 = arith.constant 0.000000e+00 : f32
    %7 = vector.broadcast %cst_5 : f32 to vector<8x128xf32>
    %8 = arith.maximumf %6, %7 : vector<8x128xf32>
    %9 = arith.truncf %8 : vector<8x128xf32> to vector<8x128xbf16>
    %c0_6 = arith.constant 0 : index
    %c0_7 = arith.constant 0 : index
    %10 = vector.load %arg4[%c0_6, %c0_7] : memref<128x128xbf16, #tpu.memory_space<vmem>>, vector<128x128xbf16>
    %cst_8 = arith.constant dense<0.000000e+00> : vector<8x128xf32>
    %11 = tpu.matmul %9, %10, %cst_8 {dimension_numbers = #tpu.dot_dimension_numbers<[1], [0], [0], [1], [0, 0, 1, 1], [], []>} : vector<8x128xbf16>, vector<128x128xbf16>, vector<8x128xf32> -> vector<8x128xf32>
    %c0_9 = arith.constant 0 : index
    %c0_10 = arith.constant 0 : index
    %12 = vector.load %arg5[%c0_9, %c0_10] : memref<1x128xf32, #tpu.memory_space<vmem>>, vector<1x128xf32>
    %13 = vector.broadcast %12 : vector<1x128xf32> to vector<8x128xf32>
    %14 = arith.addf %11, %13 : vector<8x128xf32>
    %cst_11 = arith.constant 0.000000e+00 : f32
    %15 = vector.broadcast %cst_11 : f32 to vector<8x128xf32>
    %16 = arith.maximumf %14, %15 : vector<8x128xf32>
    %17 = arith.truncf %16 : vector<8x128xf32> to vector<8x128xbf16>
    %c0_12 = arith.constant 0 : index
    %c0_13 = arith.constant 0 : index
    %18 = vector.load %arg6[%c0_12, %c0_13] : memref<8x128xbf16, #tpu.memory_space<vmem>>, vector<8x128xbf16>
    tpu.vector_store %arg6[%c0_12, %c0_13], %17 {strides = array<i32>} : memref<8x128xbf16, #tpu.memory_space<vmem>>, vector<8x128xbf16>,
    return
  }
  func.func @transform_0(%arg0: i32) -> (i32, i32) {
    %c0_i32 = arith.constant 0 : i32
    %c0_i32_0 = arith.constant 0 : i32
    return %arg0, %c0_i32 : i32, i32
  }
  func.func @transform_1(%arg0: i32) -> (i32, i32) {
    %c0_i32 = arith.constant 0 : i32
    %c0_i32_0 = arith.constant 0 : i32
    %c0_i32_1 = arith.constant 0 : i32
    return %c0_i32, %c0_i32_0 : i32, i32
  }
  func.func @transform_2(%arg0: i32) -> (i32, i32) {
    %c0_i32 = arith.constant 0 : i32
    %c0_i32_0 = arith.constant 0 : i32
    %c0_i32_1 = arith.constant 0 : i32
    return %c0_i32, %c0_i32_0 : i32, i32
  }
  func.func @transform_3(%arg0: i32) -> (i32, i32) {
    %c0_i32 = arith.constant 0 : i32
    %c0_i32_0 = arith.constant 0 : i32
    %c0_i32_1 = arith.constant 0 : i32
    return %c0_i32, %c0_i32_0 : i32, i32
  }
  func.func @transform_4(%arg0: i32) -> (i32, i32) {
    %c0_i32 = arith.constant 0 : i32
    %c0_i32_0 = arith.constant 0 : i32
    %c0_i32_1 = arith.constant 0 : i32
    return %c0_i32, %c0_i32_0 : i32, i32
  }
  func.func @transform_5(%arg0: i32) -> (i32, i32) {
    %c0_i32 = arith.constant 0 : i32
    %c0_i32_0 = arith.constant 0 : i32
    return %arg0, %c0_i32 : i32, i32
  }
}

</mosaic_0001>

<llo_original>
// kernel: tpu_custom_call.1
$region0: #{tpu_custom_call.1}
  #allocation0 [shape = 'u32[]', space=smem, size = 0x4, offset = 0x4, fixed_abs, tag = 'smem constant byte address 0x4 - core index']
  #allocation1 [shape = 'u32[72,128]{1,0:T(1,128)}', space=vmem, size = 0x9000, scoped, tag = 'internal scratch']
  %s0 = inlined_call_operand.hbm [shape: f32[8,16], index: 0, kind: input, shape index: {}]
  %s1 = inlined_call_operand.hbm [shape: bf16[16,128], index: 1, kind: input, shape index: {}]
  %s2 = inlined_call_operand.vmem [shape: f32[1,128], index: 2, kind: input, shape index: {}]
  %s3 = inlined_call_operand.hbm [shape: bf16[128,128], index: 3, kind: input, shape index: {}]
  %s4 = inlined_call_operand.vmem [shape: f32[1,128], index: 4, kind: input, shape index: {}]
  %s5 = inlined_call_operand.hbm [shape: bf16[8,128], index: 5, kind: output, shape index: {}]
  %s6 = sld [smem:[#allocation0]]
  $region42: #{tpu_custom_call.1} parent=0
    _
  %s8 = ssub.s32 1, %s6
  %s9 = scalar_select 0, %s8, %s6
  $region1: #{tpu_custom_call.1} parent=0
    #allocation2 [shape = 'u8[4096]{0}', space=vmem, size = 0x1000, scoped, tag = 'input window, operand 0, single buffered']
    #allocation3 [shape = 's32[1]{0}', space=sflag, size = 0x4, scoped, tag = 'scoped memory for tpu_custom_call.1']
    #allocation4 [shape = 's32[1]{0}', space=sflag, size = 0x4, scoped, tag = 'scoped memory for tpu_custom_call.1']
    #allocation5 [shape = 'u8[4096]{0}', space=vmem, size = 0x1000, scoped, tag = 'input window, operand 1, single buffered']
    #allocation6 [shape = 's32[1]{0}', space=sflag, size = 0x4, scoped, tag = 'scoped memory for tpu_custom_call.1']
    #allocation7 [shape = 'u8[32768]{0}', space=vmem, size = 0x8000, scoped, tag = 'input window, operand 3, single buffered']
    #allocation8 [shape = 'u8[2048]{0}', space=vmem, size = 0x800, scoped, tag = 'output window, operand 0, single buffered']
    %10 = vsyncpa [#allocation3], 0
    %11 = vsyncpa [#allocation6], 0
    %12 = vsyncpa [#allocation4], 0
    // Predicated region
    $region2: #{tpu_custom_call.1} parent=1 // pred_check
      _
    $region3: #{tpu_custom_call.1} parent=1 // pred_check_branch
      %14 = sbr.rel (0) target = $region5
    $region4: #{tpu_custom_call.1} parent=1 // pred_region
      %16 = vsyncadd [#allocation3], 0
      %s18 = sshll.u32 %s0, 4
      %s19 = int_to_ptr.hbm [resolvable:$true] %s18
      %s20 = sshll.u32 [#allocation2], 4
      %s21 = int_to_ptr.vmem [resolvable:$true] %s20
      %23 = dma.hbm_to_vmem [thread:$0]  %s19, 128, %s21, [#allocation3]
    $region5: #{tpu_custom_call.1} parent=1 // pred_fallthru
      _
    // Predicated region
    $region6: #{tpu_custom_call.1} parent=1 // pred_check
      _
    $region7: #{tpu_custom_call.1} parent=1 // pred_check_branch
      %25 = sbr.rel (0) target = $region9
    $region8: #{tpu_custom_call.1} parent=1 // pred_region
      %27 = vsyncadd [#allocation6], 0
      %s28 = sshll.u32 %s1, 4
      %s29 = int_to_ptr.hbm [resolvable:$true] %s28
      %s30 = sshll.u32 [#allocation5], 4
      %s31 = int_to_ptr.vmem [resolvable:$true] %s30
      %36 = dma.hbm_to_vmem [thread:$0]  %s29, 128, %s31, [#allocation6], 64, 64, 4
    $region9: #{tpu_custom_call.1} parent=1 // pred_fallthru
      _
    // Predicated region
    $region10: #{tpu_custom_call.1} parent=1 // pred_check
      _
    $region11: #{tpu_custom_call.1} parent=1 // pred_check_branch
      %38 = sbr.rel (0) target = $region13
    $region12: #{tpu_custom_call.1} parent=1 // pred_region
      _
    $region13: #{tpu_custom_call.1} parent=1 // pred_fallthru
      _
    // Predicated region
    $region14: #{tpu_custom_call.1} parent=1 // pred_check
      _
    $region15: #{tpu_custom_call.1} parent=1 // pred_check_branch
      %40 = sbr.rel (0) target = $region17
    $region16: #{tpu_custom_call.1} parent=1 // pred_region
      %42 = vsyncadd [#allocation6], 0
      %s43 = sshll.u32 %s3, 4
      %s44 = int_to_ptr.hbm [resolvable:$true] %s43
      %s45 = sshll.u32 [#allocation7], 4
      %s46 = int_to_ptr.vmem [resolvable:$true] %s45
      %51 = dma.hbm_to_vmem [thread:$0]  %s44, 1024, %s46, [#allocation6], 64, 64, 4
    $region17: #{tpu_custom_call.1} parent=1 // pred_fallthru
      _
    // Predicated region
    $region18: #{tpu_custom_call.1} parent=1 // pred_check
      _
    $region19: #{tpu_custom_call.1} parent=1 // pred_check_branch
      %53 = sbr.rel (0) target = $region21
    $region20: #{tpu_custom_call.1} parent=1 // pred_region
      _
    $region21: #{tpu_custom_call.1} parent=1 // pred_fallthru
      _
    // Predicated region
    $region22: #{tpu_custom_call.1} parent=1 // pred_check
      _
    $region23: #{tpu_custom_call.1} parent=1 // pred_check_branch
      %55 = sbr.rel (0) target = $region25
    $region24: #{tpu_custom_call.1} parent=1 // pred_region
      %57 = dma.done [#allocation3], 128
    $region25: #{tpu_custom_call.1} parent=1 // pred_fallthru
      _
    // Predicated region
    $region26: #{tpu_custom_call.1} parent=1 // pred_check
      _
    $region27: #{tpu_custom_call.1} parent=1 // pred_check_branch
      %59 = sbr.rel (0) target = $region29
    $region28: #{tpu_custom_call.1} parent=1 // pred_region
      %61 = dma.done [#allocation6], 128
    $region29: #{tpu_custom_call.1} parent=1 // pred_fallthru
      _
    // Predicated region
    $region30: #{tpu_custom_call.1} parent=1 // pred_check
      _
    $region31: #{tpu_custom_call.1} parent=1 // pred_check_branch
      %63 = sbr.rel (0) target = $region33
    $region32: #{tpu_custom_call.1} parent=1 // pred_region
      %65 = dma.done [#allocation6], 1024
    $region33: #{tpu_custom_call.1} parent=1 // pred_fallthru
      _
    %v67 = vld [vmem:[#allocation2] sm:$0xff]
    %v68 = vpack.c.bf16 %v67, %v67
    %v69 = vld [vmem:[#allocation5] sm:$0xf]
    %v70 = vld [vmem:[#allocation5 + $0x4] sm:$0xf]
    %v71 = vld [vmem:[%s2] sm:$0x1]
    %v73 = vperm.slane %v71, 0
    %v77 = vunpack.c.l.b16 %v69
    %v78 = vunpack.c.l.b16 %v70
    %v79 = vpack.c.b16 %v78, %v77
    %vm81 = vcmask 130048
    %v83 = vsel %vm81, %v68, 0
    %85 = vmatpush.bf16.msra.mxu0 0
    %86 = vmatpush.bf16.msra.mxu0 0
    %87 = vmatpush.bf16.msra.mxu0 0
    %88 = vmatpush.bf16.msra.mxu0 0
    %89 = vmatpush.bf16.msra.mxu0 0
    %90 = vmatpush.bf16.msra.mxu0 0
    %91 = vmatpush.bf16.msra.mxu0 0
    %92 = vmatpush.bf16.msra.mxu0 %v79
    %93 = vmatmul.bf16.gmra.mxu0 %v83
    %v94 = vpop.f32.mrf.mxu0
    %v95 = vadd.f32 %v73, %v94
    %v96 = vpop.f32.mrf.mxu0
    %97 = vdwg.mxu0
    %v98 = vmax.f32 %v95, 0.0
    %v99 = vpack.c.bf16 %v98, %v98
    %v100 = vld [vmem:[#allocation7] sm:$0xf]
    %v101 = vld [vmem:[#allocation7 + $0x4] sm:$0xf]
    %v102 = vld [vmem:[#allocation7 + $0x8] sm:$0xf]
    %v103 = vld [vmem:[#allocation7 + $0xc] sm:$0xf]
    %v104 = vld [vmem:[#allocation7 + $0x10] sm:$0xf]
    %v105 = vld [vmem:[#allocation7 + $0x14] sm:$0xf]
    %v106 = vld [vmem:[#allocation7 + $0x18] sm:$0xf]
    %v107 = vld [vmem:[#allocation7 + $0x1c] sm:$0xf]
    %v108 = vld [vmem:[#allocation7 + $0x20] sm:$0xf]
    %v109 = vld [vmem:[#allocation7 + $0x24] sm:$0xf]
    %v110 = vld [vmem:[#allocation7 + $0x28] sm:$0xf]
    %v111 = vld [vmem:[#allocation7 + $0x2c] sm:$0xf]
    %v112 = vld [vmem:[#allocation7 + $0x30] sm:$0xf]
    %v113 = vld [vmem:[#allocation7 + $0x34] sm:$0xf]
    %v114 = vld [vmem:[#allocation7 + $0x38] sm:$0xf]
    %v115 = vld [vmem:[#allocation7 + $0x3c] sm:$0xf]
    %v116 = vld [vmem:[%s4] sm:$0x1]
    %v118 = vperm.slane %v116, 0
    %v136 = vunpack.c.l.b16 %v100
    %v137 = vunpack.c.l.b16 %v101
    %v138 = vunpack.c.l.b16 %v102
    %v139 = vunpack.c.l.b16 %v103
    %v140 = vunpack.c.l.b16 %v104
    %v141 = vunpack.c.l.b16 %v105
    %v142 = vunpack.c.l.b16 %v106
    %v143 = vunpack.c.l.b16 %v107
    %v144 = vunpack.c.l.b16 %v108
    %v145 = vunpack.c.l.b16 %v109
    %v146 = vunpack.c.l.b16 %v110
    %v147 = vunpack.c.l.b16 %v111
    %v148 = vunpack.c.l.b16 %v112
    %v149 = vunpack.c.l.b16 %v113
    %v150 = vunpack.c.l.b16 %v114
    %v151 = vunpack.c.l.b16 %v115
    %v152 = vpack.c.b16 %v137, %v136
    %v153 = vpack.c.b16 %v139, %v138
    %v154 = vpack.c.b16 %v141, %v140
    %v155 = vpack.c.b16 %v143, %v142
    %v156 = vpack.c.b16 %v145, %v144
    %v157 = vpack.c.b16 %v147, %v146
    %v158 = vpack.c.b16 %v149, %v148
    %v159 = vpack.c.b16 %v151, %v150
    %168 = vmatpush.bf16.msra.mxu0 %v159
    %169 = vmatpush.bf16.msra.mxu0 %v158
    %170 = vmatpush.bf16.msra.mxu0 %v157
    %171 = vmatpush.bf16.msra.mxu0 %v156
    %172 = vmatpush.bf16.msra.mxu0 %v155
    %173 = vmatpush.bf16.msra.mxu0 %v154
    %174 = vmatpush.bf16.msra.mxu0 %v153
    %175 = vmatpush.bf16.msra.mxu0 %v152
    %176 = vmatmul.bf16.gmra.mxu0 %v99
    %v177 = vpop.f32.mrf.mxu0
    %v178 = vadd.f32 %v118, %v177
    %v179 = vpop.f32.mrf.mxu0
    %180 = vdwg.mxu0
    %v181 = vmax.f32 %v178, 0.0
    %v182 = vpack.c.bf16 %v181, %v181
    %183 = vst [vmem:[#allocation8] sm:$0xf] %v182
    // Predicated region
    $region34: #{tpu_custom_call.1} parent=1 // pred_check
      _
    $region35: #{tpu_custom_call.1} parent=1 // pred_check_branch
      %185 = sbr.rel (0) target = $region37
    $region36: #{tpu_custom_call.1} parent=1 // pred_region
      %187 = vsyncadd [#allocation4], 0
      %s189 = sshll.u32 [#allocation8], 4
      %s190 = int_to_ptr.vmem [resolvable:$true] %s189
      %s191 = sshll.u32 %s5, 4
      %s192 = int_to_ptr.hbm [resolvable:$true] %s191
      %194 = dma.vmem_to_hbm [thread:$0]  %s190, 64, %s192, [#allocation4]
    $region37: #{tpu_custom_call.1} parent=1 // pred_fallthru
      _
    // Predicated region
    $region38: #{tpu_custom_call.1} parent=1 // pred_check
      _
    $region39: #{tpu_custom_call.1} parent=1 // pred_check_branch
      %196 = sbr.rel (0) target = $region41
    $region40: #{tpu_custom_call.1} parent=1 // pred_region
      %198 = dma.done [#allocation4], 64
    $region41: #{tpu_custom_call.1} parent=1 // pred_fallthru
      _
    %199 = vsyncpa [#allocation3], 1
    %200 = vsyncpa [#allocation6], 1
    %201 = vsyncpa [#allocation4], 1

</llo_original>
